<compile_context>
chip_gen: v6e
topology: v6e:2x2x1
jax: 0.10.0
libtpu: 0.0.40
codegen_flags: <defaults>
</compile_context>

<pallas_src>
import functools

import jax
import jax.numpy as jnp
import numpy as np
from jax.experimental import pallas as pl
from jax.experimental.pallas import tpu as pltpu


def _round_up(x, m):
    return ((x + m - 1) // m) * m


# ----------------------------------------------------------------------------- glue: unfold
def _same_pad_amounts(H, W, k, stride):
    out_r = -(-H // stride)
    out_c = -(-W // stride)
    pad_r = max(0, (out_r - 1) * stride + k - H)
    pad_c = max(0, (out_c - 1) * stride + k - W)
    top = pad_r // 2
    left = pad_c // 2
    return top, pad_r - top, left, pad_c - left


def extract_patches(x, k, stride):
    """torch.nn.Unfold with 'same' padding.  x: (B,C,H,W) -> (B, L, C*k*k)."""
    B, C, H, W = x.shape
    t, bm, l, r = _same_pad_amounts(H, W, k, stride)
    xp = jnp.pad(x, ((0, 0), (0, 0), (t, bm), (l, r)))
    Ho = -(-H // stride)
    Wo = -(-W // stride)
    cols = []
    for kh in range(k):
        for kw in range(k):
            cols.append(xp[:, :, kh:kh + (Ho - 1) * stride + 1:stride,
                               kw:kw + (Wo - 1) * stride + 1:stride])
    p = jnp.stack(cols, axis=2)                     # (B, C, k*k, Ho, Wo)
    p = p.reshape(B, C * k * k, Ho * Wo)            # unfold channel ordering (c, kh, kw)
    return jnp.transpose(p, (0, 2, 1))              # (B, L, C*k*k)


# ----------------------------------------------------------------------------- Pallas kernel
def _attn_kernel(pq_ref, pf_ref, r_ref, mm_ref, t_ref, *, eps_total, scale):
    # pq_ref : (TQ, Dp)   query-patch tile (zero padded in D and possibly along q)
    # pf_ref : (L,  Dp)   filter patches   -- resident across the q-tile grid axis
    # r_ref  : (L,  Drp)  raw background patches (reconstruction values), resident
    # mm_ref : (1,  L)    per-filter mask validity, lane-dense row, resident
    pf = pf_ref[...]
    # per-filter normalization with softmax scale folded in (L x Dp VPU work, EUP rsqrt)
    inv_norm = jax.lax.rsqrt(jnp.sum(pf * pf, axis=1, keepdims=True) + eps_total)
    pn = pf * (inv_norm * scale)

    # transposed similarity S[q, l] = <P[q], scale * Pnorm[l]>  (no (L,L) transpose needed)
    s = jax.lax.dot_general(
        pq_ref[...].astype(jnp.bfloat16), pn.astype(jnp.bfloat16),
        dimension_numbers=(((1,), (1,)), ((), ())),
        preferred_element_type=jnp.float32)                      # (TQ, L) f32

    mm = mm_ref[...]                                             # (1, L) -> broadcast over q
    s = s * mm
    # softmax over the filter axis (lane axis); masked filters contribute exp(0-max),
    # matching the original PyTorch code (not a true -inf masked softmax).
    s = s - jnp.max(s, axis=-1, keepdims=True)
    e = jnp.exp(s)
    a = e * pl.reciprocal(jnp.sum(e, axis=-1, keepdims=True), approx=True)
    a = a * mm

    # attention-weighted sum of raw patches (== F.conv_transpose2d accumulation)
    t_ref[...] = jnp.dot(a.astype(jnp.bfloat16), r_ref[...].astype(jnp.bfloat16),
                         preferred_element_type=jnp.float32)


def attention_transfer(P, R, mm, *, scale, eps_total, tq=256):
    """P: (B,L,D) patches (filters & queries), R: (B,L,Dr) raw patches, mm: (B,L,1) mask."""
    B, L, D = P.shape
    Dr = R.shape[2]

    # Lane-dense inner dims: MXU contraction dim and output last dim padded to 128.
    Dp = _round_up(D, 128)
    Drp = _round_up(Dr, 128)
    # Query tile (sublane aligned).  For L <= tq this is a single tile.
    TQ = min(_round_up(tq, 8), _round_up(L, 8))
    Lq = _round_up(L, TQ)

    Pf = jnp.pad(P, ((0, 0), (0, 0), (0, Dp - D)))               # filters (full L)
    Pq = jnp.pad(P, ((0, 0), (0, Lq - L), (0, Dp - D)))          # queries (tiled over q)
    Rp = jnp.pad(R, ((0, 0), (0, 0), (0, Drp - Dr)))
    mmr = jnp.reshape(mm, (B, 1, L))                             # lane-dense mask row

    kern = functools.partial(_attn_kernel, eps_total=eps_total, scale=scale)
    out = pl.pallas_call(
        kern,
        out_shape=jax.ShapeDtypeStruct((B, Lq, Drp), jnp.float32),
        grid=(B, Lq // TQ),
        in_specs=[
            pl.BlockSpec((None, TQ, Dp), lambda bi, qi: (bi, qi, 0)),   # queries: tiled over q
            pl.BlockSpec((None, L, Dp), lambda bi, qi: (bi, 0, 0)),     # filters: resident over q
            pl.BlockSpec((None, L, Drp), lambda bi, qi: (bi, 0, 0)),    # raw patches: resident
            pl.BlockSpec((None, 1, L), lambda bi, qi: (bi, 0, 0)),      # mask row: resident
        ],
        out_specs=pl.BlockSpec((None, TQ, Drp), lambda bi, qi: (bi, qi, 0)),
        compiler_params=pltpu.CompilerParams(
            dimension_semantics=("parallel", "parallel"),
            # demo uses a few hundred KiB; raise for large L on v5e/v6e, shrink TQ on v7x (64 MiB VMEM)
            vmem_limit_bytes=32 * 1024 * 1024),
    )(Pq, Pf, Rp, mmr)
    return out[:, :L, :Dr]


def _attention_ref(P, R, mm, *, scale, eps_total, match_kernel_precision=False):
    """Plain-JAX reference of the hot path.

    match_kernel_precision=False : original full-f32 semantics (mirrors the PyTorch module).
    match_kernel_precision=True  : mirrors the kernel's precision choices (bf16 MXU operands,
                                   f32 accumulation) so the self-check isolates implementation
                                   correctness from the deliberate bf16 tradeoff.
    """
    if match_kernel_precision:
        inv_norm = jax.lax.rsqrt(jnp.sum(P * P, axis=2, keepdims=True) + eps_total)
        Pn = P * (inv_norm * scale)
        S = jnp.einsum('bqd,bld->bql', P.astype(jnp.bfloat16), Pn.astype(jnp.bfloat16),
                       preferred_element_type=jnp.float32)            # S[q, l]
        mm_row = jnp.transpose(mm, (0, 2, 1))                         # (B, 1, L)
        S = S * mm_row
        A = jax.nn.softmax(S, axis=2) * mm_row
        return jnp.einsum('bql,bld->bqd', A.astype(jnp.bfloat16), R.astype(jnp.bfloat16),
                          preferred_element_type=jnp.float32)
    norm = jnp.sqrt(jnp.sum(P * P, axis=2, keepdims=True) + eps_total)
    Pn = P / norm
    S = jnp.einsum('bld,bqd->blq', Pn, P)
    S = S * mm * scale
    A = jax.nn.softmax(S, axis=1) * mm
    return jnp.einsum('blq,bld->bqd', A, R)


# ----------------------------------------------------------------------------- forward pass
def patch_transfer_cluster(f, b, mask=None, *, ksize=3, stride=1, rate=2,
                           softmax_scale=10.0, use_pallas=True, tq=256,
                           match_kernel_precision=False):
    B, C, Hb, Wb = b.shape
    kernel = 2 * rate

    # raw background patches used for reconstruction (conv_transpose weights)
    R = extract_patches(b, kernel, rate * stride).astype(jnp.float32)   # (B, Lr, C*kernel^2)

    # nearest down-sample by `rate` (F.interpolate(scale_factor=1/rate, mode='nearest'))
    fd = f[:, :, ::rate, ::rate]
    Hf, Wf = fd.shape[2], fd.shape[3]
    L = Hf * Wf

    # foreground patches: serve both as matching filters and as query patches of xi
    P = extract_patches(fd, ksize, stride).astype(jnp.float32)           # (B, L, C*ksize^2)
    assert R.shape[1] == L, "foreground/background spatial sizes must match"

    # mask -> per-patch validity mm (1.0 iff the mask patch is entirely zero)
    if mask is None:
        mm = jnp.ones((B, L, 1), jnp.float32)
    else:
        md = mask[:, :, ::rate, ::rate]
        M = extract_patches(md, ksize, stride)
        mm = (jnp.mean(M, axis=2, keepdims=True) == 0.0).astype(jnp.float32)

    eps_total = 1e-4 * (C * ksize * ksize)   # escape_NaN added per element, then summed
    if use_pallas:
        T = attention_transfer(P, R, mm, scale=float(softmax_scale),
                               eps_total=eps_total, tq=tq)               # (B, L, C*kernel^2)
    else:
        T = _attention_ref(P, R, mm, scale=float(softmax_scale), eps_total=eps_total,
                           match_kernel_precision=match_kernel_precision)

    # col2im fold == F.conv_transpose2d(yi, wi_center, stride=rate, padding=(kernel-rate)//2)
    pad = (kernel - rate) // 2
    Hfull = (Hf - 1) * rate + kernel
    Wfull = (Wf - 1) * rate + kernel
    Tr = T.reshape(B, Hf, Wf, C, kernel, kernel)
    out_full = jnp.zeros((B, C, Hfull, Wfull), jnp.float32)
    for kh in range(kernel):
        for kw in range(kernel):
            contrib = jnp.transpose(Tr[:, :, :, :, kh, kw], (0, 3, 1, 2))  # (B,C,Hf,Wf)
            out_full = out_full.at[:, :,
                                   kh:kh + (Hf - 1) * rate + 1:rate,
                                   kw:kw + (Wf - 1) * rate + 1:rate].add(contrib)
    out = out_full[:, :, pad:Hfull - pad, pad:Wfull - pad]
    return out


# ----------------------------------------------------------------------------- demo
if __name__ == "__main__":
    key = jax.random.PRNGKey(0)
    kf, kb = jax.random.split(key)
    B, C, H, W = 2, 4, 16, 16
    f = jax.random.normal(kf, (B, C, H, W), dtype=jnp.float32)
    b = jax.random.normal(kb, (B, C, H, W), dtype=jnp.float32)

    run = functools.partial(patch_transfer_cluster, ksize=3, stride=1, rate=2,
                            softmax_scale=10.0)

    # ---- no-mask path (single q-tile) --------------------------------------
    out = jax.block_until_ready(run(f, b, mask=None, use_pallas=True))
    assert out.shape == (B, C, H, W), out.shape

    # tight check vs. a precision-matched JAX reference (bf16 MXU operands, f32 accum)
    ref_matched = jax.block_until_ready(
        run(f, b, mask=None, use_pallas=False, match_kernel_precision=True))
    np.testing.assert_allclose(np.asarray(out), np.asarray(ref_matched),
                               rtol=1e-2, atol=1e-2)

    # loose sanity bound vs. the original full-f32 semantics (bf16 MXU tradeoff)
    ref_f32 = jax.block_until_ready(
        run(f, b, mask=None, use_pallas=False, match_kernel_precision=False))
    np.testing.assert_allclose(np.asarray(out), np.asarray(ref_f32),
                               rtol=1e-1, atol=1e-1)

    # ---- masked path, small tq=32 so the q-tile grid axis (2 tiles) is exercised
    mask = jnp.zeros((B, 1, H, W), jnp.float32).at[:, :, 4:12, 4:12].set(1.0)
    out_m = jax.block_until_ready(run(f, b, mask=mask, use_pallas=True, tq=32))
    ref_m = jax.block_until_ready(
        run(f, b, mask=mask, use_pallas=False, match_kernel_precision=True))
    np.testing.assert_allclose(np.asarray(out_m), np.asarray(ref_m),
                               rtol=1e-2, atol=1e-2)

    print("KERNEL_OK")
</pallas_src>

<mosaic_0001>
module attributes {stable_mosaic.version = 11 : i64} {
  func.func @_attn_kernel(%arg0: i32, %arg1: i32, %arg2: memref<1x64x128xf32, #tpu.memory_space<vmem>>, %arg3: memref<1x64x128xf32, #tpu.memory_space<vmem>>, %arg4: memref<1x64x128xf32, #tpu.memory_space<vmem>>, %arg5: memref<1x1x64xf32, #tpu.memory_space<vmem>>, %arg6: memref<1x64x128xf32, #tpu.memory_space<vmem>>) attributes {dimension_semantics = [#tpu.dimension_semantics<parallel>, #tpu.dimension_semantics<parallel>], iteration_bounds = array<i64: 2, 1>, scalar_prefetch = 0 : i64, scratch_operands = 0 : i64, tpu.core_type = #tpu.core_type<tc>, window_params = [{transform_indices = @transform_0, window_bounds = array<i64: 1, 64, 128>}, {transform_indices = @transform_1, window_bounds = array<i64: 1, 64, 128>}, {transform_indices = @transform_2, window_bounds = array<i64: 1, 64, 128>}, {transform_indices = @transform_3, window_bounds = array<i64: 1, 1, 64>}, {transform_indices = @transform_4, window_bounds = array<i64: 1, 64, 128>}]} {
    %c0 = arith.constant 0 : index
    %c0_0 = arith.constant 0 : index
    %c0_1 = arith.constant 0 : index
    %0 = vector.load %arg3[%c0, %c0_0, %c0_1] : memref<1x64x128xf32, #tpu.memory_space<vmem>>, vector<1x64x128xf32>
    %1 = vector.shape_cast %0 : vector<1x64x128xf32> to vector<64x128xf32>
    %2 = arith.mulf %1, %1 : vector<64x128xf32>
    %cst = arith.constant dense<0.000000e+00> : vector<64xf32>
    %3 = vector.multi_reduction <add>, %2, %cst [1] : vector<64x128xf32> to vector<64xf32>
    %4 = vector.shape_cast %3 : vector<64xf32> to vector<64x1xf32>
    %cst_2 = arith.constant 3.600000e-03 : f32
    %5 = vector.broadcast %cst_2 : f32 to vector<64x1xf32>
    %6 = arith.addf %4, %5 : vector<64x1xf32>
    %7 = math.rsqrt %6 : vector<64x1xf32>
    %cst_3 = arith.constant 1.000000e+01 : f32
    %8 = vector.broadcast %cst_3 : f32 to vector<64x1xf32>
    %9 = arith.mulf %7, %8 : vector<64x1xf32>
    %10 = vector.broadcast %9 : vector<64x1xf32> to vector<64x128xf32>
    %11 = arith.mulf %1, %10 : vector<64x128xf32>
    %c0_4 = arith.constant 0 : index
    %c0_5 = arith.constant 0 : index
    %c0_6 = arith.constant 0 : index
    %12 = vector.load %arg2[%c0_4, %c0_5, %c0_6] : memref<1x64x128xf32, #tpu.memory_space<vmem>>, vector<1x64x128xf32>
    %13 = vector.shape_cast %12 : vector<1x64x128xf32> to vector<64x128xf32>
    %14 = arith.truncf %13 : vector<64x128xf32> to vector<64x128xbf16>
    %15 = arith.truncf %11 : vector<64x128xf32> to vector<64x128xbf16>
    %cst_7 = arith.constant dense<0.000000e+00> : vector<64x64xf32>
    %16 = tpu.matmul %14, %15, %cst_7 {dimension_numbers = #tpu.dot_dimension_numbers<[1], [1], [0], [0], [0, 0, 1, 0], [], []>} : vector<64x128xbf16>, vector<64x128xbf16>, vector<64x64xf32> -> vector<64x64xf32>
    %c0_8 = arith.constant 0 : index
    %c0_9 = arith.constant 0 : index
    %c0_10 = arith.constant 0 : index
    %17 = vector.load %arg5[%c0_8, %c0_9, %c0_10] : memref<1x1x64xf32, #tpu.memory_space<vmem>>, vector<1x1x64xf32>
    %18 = vector.shape_cast %17 : vector<1x1x64xf32> to vector<1x64xf32>
    %19 = vector.broadcast %18 : vector<1x64xf32> to vector<64x64xf32>
    %20 = arith.mulf %16, %19 : vector<64x64xf32>
    %cst_11 = arith.constant dense<0xFF800000> : vector<64xf32>
    %21 = vector.multi_reduction <maximumf>, %20, %cst_11 [1] : vector<64x64xf32> to vector<64xf32>
    %22 = vector.shape_cast %21 : vector<64xf32> to vector<64x1xf32>
    %23 = vector.broadcast %22 : vector<64x1xf32> to vector<64x64xf32>
    %24 = arith.subf %20, %23 : vector<64x64xf32>
    %25 = math.exp %24 : vector<64x64xf32>
    %cst_12 = arith.constant dense<0.000000e+00> : vector<64xf32>
    %26 = vector.multi_reduction <add>, %25, %cst_12 [1] : vector<64x64xf32> to vector<64xf32>
    %27 = vector.shape_cast %26 : vector<64xf32> to vector<64x1xf32>
    %28 = tpu.reciprocal %27 {approx = true} : vector<64x1xf32> -> vector<64x1xf32>
    %29 = vector.broadcast %28 : vector<64x1xf32> to vector<64x64xf32>
    %30 = arith.mulf %25, %29 : vector<64x64xf32>
    %31 = vector.broadcast %18 : vector<1x64xf32> to vector<64x64xf32>
    %32 = arith.mulf %30, %31 : vector<64x64xf32>
    %33 = arith.truncf %32 : vector<64x64xf32> to vector<64x64xbf16>
    %c0_13 = arith.constant 0 : index
    %c0_14 = arith.constant 0 : index
    %c0_15 = arith.constant 0 : index
    %34 = vector.load %arg4[%c0_13, %c0_14, %c0_15] : memref<1x64x128xf32, #tpu.memory_space<vmem>>, vector<1x64x128xf32>
    %35 = vector.shape_cast %34 : vector<1x64x128xf32> to vector<64x128xf32>
    %36 = arith.truncf %35 : vector<64x128xf32> to vector<64x128xbf16>
    %cst_16 = arith.constant dense<0.000000e+00> : vector<64x128xf32>
    %37 = tpu.matmul %33, %36, %cst_16 {dimension_numbers = #tpu.dot_dimension_numbers<[1], [0], [0], [1], [0, 0, 1, 1], [], []>} : vector<64x64xbf16>, vector<64x128xbf16>, vector<64x128xf32> -> vector<64x128xf32>
    %c0_17 = arith.constant 0 : index
    %c0_18 = arith.constant 0 : index
    %c0_19 = arith.constant 0 : index
    %38 = vector.load %arg6[%c0_17, %c0_18, %c0_19] : memref<1x64x128xf32, #tpu.memory_space<vmem>>, vector<1x64x128xf32>
    %39 = vector.shape_cast %38 : vector<1x64x128xf32> to vector<64x128xf32>
    %40 = vector.shape_cast %37 : vector<64x128xf32> to vector<1x64x128xf32>
    tpu.vector_store %arg6[%c0_17, %c0_18, %c0_19], %40 {strides = array<i32>} : memref<1x64x128xf32, #tpu.memory_space<vmem>>, vector<1x64x128xf32>,
    return
  }
  func.func @transform_0(%arg0: i32, %arg1: i32) -> (i32, i32, i32) {
    %c0_i32 = arith.constant 0 : i32
    %c0_i32_0 = arith.constant 0 : i32
    return %arg0, %arg1, %c0_i32 : i32, i32, i32
  }
  func.func @transform_1(%arg0: i32, %arg1: i32) -> (i32, i32, i32) {
    %c0_i32 = arith.constant 0 : i32
    %c0_i32_0 = arith.constant 0 : i32
    %c0_i32_1 = arith.constant 0 : i32
    return %arg0, %c0_i32, %c0_i32_0 : i32, i32, i32
  }
  func.func @transform_2(%arg0: i32, %arg1: i32) -> (i32, i32, i32) {
    %c0_i32 = arith.constant 0 : i32
    %c0_i32_0 = arith.constant 0 : i32
    %c0_i32_1 = arith.constant 0 : i32
    return %arg0, %c0_i32, %c0_i32_0 : i32, i32, i32
  }
  func.func @transform_3(%arg0: i32, %arg1: i32) -> (i32, i32, i32) {
    %c0_i32 = arith.constant 0 : i32
    %c0_i32_0 = arith.constant 0 : i32
    %c0_i32_1 = arith.constant 0 : i32
    return %arg0, %c0_i32, %c0_i32_0 : i32, i32, i32
  }
  func.func @transform_4(%arg0: i32, %arg1: i32) -> (i32, i32, i32) {
    %c0_i32 = arith.constant 0 : i32
    %c0_i32_0 = arith.constant 0 : i32
    return %arg0, %arg1, %c0_i32 : i32, i32, i32
  }
}

</mosaic_0001>

<llo_original>
// kernel: tpu_custom_call.1
$region0: #{tpu_custom_call.1}
  #allocation0 [shape = 'u32[]', space=smem, size = 0x4, offset = 0x4, fixed_abs, tag = 'smem constant byte address 0x4 - core index']
  #allocation1 [shape = 'u32[144,128]{1,0:T(1,128)}', space=vmem, size = 0x12000, scoped, tag = 'internal scratch']
  %s0 = inlined_call_operand.hbm [shape: f32[2,64,128], index: 0, kind: input, shape index: {}]
  %s1 = inlined_call_operand.hbm [shape: f32[2,64,128], index: 1, kind: input, shape index: {}]
  %s2 = inlined_call_operand.hbm [shape: f32[2,64,128], index: 2, kind: input, shape index: {}]
  %s3 = inlined_call_operand.vmem [shape: f32[2,1,64], index: 3, kind: input, shape index: {}]
  %s4 = inlined_call_operand.hbm [shape: f32[2,64,128], index: 4, kind: output, shape index: {}]
  %s5 = sld [smem:[#allocation0]]
  $region61: #{tpu_custom_call.1} parent=0
    _
  %s7 = ssub.s32 1, %s5
  %s8 = scalar_select 0, %s7, %s5
  $region1: #{tpu_custom_call.1} parent=0
    #allocation2 [shape = 'u8[65536]{0}', space=vmem, size = 0x10000, scoped, tag = 'input window, operand 0']
    #allocation3 [shape = 's32[2]{0}', space=sflag, size = 0x8, scoped, tag = 'scoped memory for tpu_custom_call.1']
    #allocation4 [shape = 's32[2]{0}', space=sflag, size = 0x8, scoped, tag = 'scoped memory for tpu_custom_call.1']
    #allocation5 [shape = 'u8[65536]{0}', space=vmem, size = 0x10000, scoped, tag = 'input window, operand 1']
    #allocation6 [shape = 's32[2]{0}', space=sflag, size = 0x8, scoped, tag = 'scoped memory for tpu_custom_call.1']
    #allocation7 [shape = 'u8[65536]{0}', space=vmem, size = 0x10000, scoped, tag = 'input window, operand 2']
    #allocation8 [shape = 'u8[65536]{0}', space=vmem, size = 0x10000, scoped, tag = 'output window, operand 0']
    %9 = vsyncpa [#allocation3], 0
    %s10 = scalar_lea.sflag [#allocation3], 1
    %11 = vsyncpa %s10, 0
    %12 = vsyncpa [#allocation6], 0
    %s13 = scalar_lea.sflag [#allocation6], 1
    %14 = vsyncpa %s13, 0
    %15 = vsyncpa [#allocation4], 0
    %s16 = scalar_lea.sflag [#allocation4], 1
    %17 = vsyncpa %s16, 0
    loop: start=0, step=1, limit=4
    $region2: #{tpu_custom_call.1} parent=1 // loop_pre_header
      _
    $region3: #{tpu_custom_call.1} parent=1 // loop_header
      %s19 = sphi 0, %s23
      %p20 = scmp.ge.s32.totalorder %s19, 4
      %s26 = sphi 0, %s38
      %s27 = sphi 0, %s34
      %s28 = sphi 0, %s26
      %s29 = sphi 0, %s27
      %s30 = sphi 0, %s28
      %s31 = sphi 0, %s29
      %s43 = sphi 0, %s45
      %s46 = sphi 0, %s43
      %s47 = sphi 0, %s46
      %s63 = sphi 0, %s47
      %s69 = sphi 0, %s71
      %s72 = sphi 0, %s69
      %s73 = sphi 0, %s72
      %s89 = sphi 0, %s73
      %s95 = sphi 0, %s97
      %s98 = sphi 0, %s95
      %s99 = sphi 0, %s98
      %s115 = sphi 0, %s99
      %s121 = sphi 0, %s123
      %s124 = sphi 0, %s121
      %s125 = sphi 0, %s124
      %s141 = sphi 0, %s125
      %s149 = sphi 0, %s151
      %s152 = sphi 0, %s149
      %s153 = sphi 0, %s152
      %s169 = sphi 0, %s153
    $region4: #{tpu_custom_call.1} parent=1 // loop_header_branch
      %22 = sbr.rel (%p20) target = $region8
    $region5: #{tpu_custom_call.1} parent=1 // loop_body
      %s24 = ssub.s32 %s19, 1
      %s25 = ssub.s32 %s19, 2
      %s32 = sadd.s32 1, %s27
      %p33 = scmp.ge.s32.totalorder %s32, 1
      %s34 = scalar_select %p33, 0, %s32
      %s35 = sadd.s32 1, %s26
      %s36 = scalar_select %p33, %s35, %s26
      %p37 = scmp.ge.s32.totalorder %s36, 2
      %s38 = scalar_select %p37, 0, %s36
      %s39 = ssub.s32 %s26, %s38
      %s40 = ssub.s32 %s27, %s34
      %s41 = sor.u32 %s39, %s40
      %p42 = scmp.eq.s32.totalorder %s41, 0
      %s44 = sadd.s32 %s43, 1
      %s45 = scalar_select %p42, %s43, %s44
      %p48 = pneg %p42
      %p49 = scmp.eq.s32.totalorder %s19, 1
      %p50 = por %p48, %p49
      %p51 = scmp.ne.s32.totalorder %s43, %s46
      %p52 = scmp.eq.s32.totalorder %s19, 0
      %p53 = por %p51, %p52
      %p54 = scmp.ne.s32.totalorder %s43, %s46
      %p55 = scmp.eq.s32.totalorder %s24, 1
      %p56 = por %p54, %p55
      %p57 = scmp.ne.s32.totalorder %s46, %s47
      %p58 = scmp.eq.s32.totalorder %s24, 0
      %p59 = por %p57, %p58
      %p60 = scmp.ne.s32.totalorder %s46, %s47
      %p61 = scmp.eq.s32.totalorder %s25, 1
      %p62 = por %p60, %p61
      %p64 = scmp.ne.s32.totalorder %s47, %s63
      %p65 = scmp.eq.s32.totalorder %s25, 0
      %p66 = por %p64, %p65
      %s67 = ssub.s32 %s26, %s38
      %p68 = scmp.eq.s32.totalorder %s67, 0
      %s70 = sadd.s32 %s69, 1
      %s71 = scalar_select %p68, %s69, %s70
      %p74 = pneg %p68
      %p75 = scmp.eq.s32.totalorder %s19, 1
      %p76 = por %p74, %p75
      %p77 = scmp.ne.s32.totalorder %s69, %s72
      %p78 = scmp.eq.s32.totalorder %s19, 0
      %p79 = por %p77, %p78
      %p80 = scmp.ne.s32.totalorder %s69, %s72
      %p81 = scmp.eq.s32.totalorder %s24, 1
      %p82 = por %p80, %p81
      %p83 = scmp.ne.s32.totalorder %s72, %s73
      %p84 = scmp.eq.s32.totalorder %s24, 0
      %p85 = por %p83, %p84
      %p86 = scmp.ne.s32.totalorder %s72, %s73
      %p87 = scmp.eq.s32.totalorder %s25, 1
      %p88 = por %p86, %p87
      %p90 = scmp.ne.s32.totalorder %s73, %s89
      %p91 = scmp.eq.s32.totalorder %s25, 0
      %p92 = por %p90, %p91
      %s93 = ssub.s32 %s26, %s38
      %p94 = scmp.eq.s32.totalorder %s93, 0
      %s96 = sadd.s32 %s95, 1
      %s97 = scalar_select %p94, %s95, %s96
      %p100 = pneg %p94
      %p101 = scmp.eq.s32.totalorder %s19, 1
      %p102 = por %p100, %p101
      %p103 = scmp.ne.s32.totalorder %s95, %s98
      %p104 = scmp.eq.s32.totalorder %s19, 0
      %p105 = por %p103, %p104
      %p106 = scmp.ne.s32.totalorder %s95, %s98
      %p107 = scmp.eq.s32.totalorder %s24, 1
      %p108 = por %p106, %p107
      %p109 = scmp.ne.s32.totalorder %s98, %s99
      %p110 = scmp.eq.s32.totalorder %s24, 0
      %p111 = por %p109, %p110
      %p112 = scmp.ne.s32.totalorder %s98, %s99
      %p113 = scmp.eq.s32.totalorder %s25, 1
      %p114 = por %p112, %p113
      %p116 = scmp.ne.s32.totalorder %s99, %s115
      %p117 = scmp.eq.s32.totalorder %s25, 0
      %p118 = por %p116, %p117
      %s119 = ssub.s32 %s26, %s38
      %p120 = scmp.eq.s32.totalorder %s119, 0
      %s122 = sadd.s32 %s121, 1
      %s123 = scalar_select %p120, %s121, %s122
      %p126 = pneg %p120
      %p127 = scmp.eq.s32.totalorder %s19, 1
      %p128 = por %p126, %p127
      %p129 = scmp.ne.s32.totalorder %s121, %s124
      %p130 = scmp.eq.s32.totalorder %s19, 0
      %p131 = por %p129, %p130
      %p132 = scmp.ne.s32.totalorder %s121, %s124
      %p133 = scmp.eq.s32.totalorder %s24, 1
      %p134 = por %p132, %p133
      %p135 = scmp.ne.s32.totalorder %s124, %s125
      %p136 = scmp.eq.s32.totalorder %s24, 0
      %p137 = por %p135, %p136
      %p138 = scmp.ne.s32.totalorder %s124, %s125
      %p139 = scmp.eq.s32.totalorder %s25, 1
      %p140 = por %p138, %p139
      %p142 = scmp.ne.s32.totalorder %s125, %s141
      %p143 = scmp.eq.s32.totalorder %s25, 0
      %p144 = por %p142, %p143
      %s145 = ssub.s32 %s26, %s38
      %s146 = ssub.s32 %s27, %s34
      %s147 = sor.u32 %s145, %s146
      %p148 = scmp.eq.s32.totalorder %s147, 0
      %s150 = sadd.s32 %s149, 1
      %s151 = scalar_select %p148, %s149, %s150
      %p154 = pneg %p148
      %p155 = scmp.eq.s32.totalorder %s19, 1
      %p156 = por %p154, %p155
      %p157 = scmp.ne.s32.totalorder %s149, %s152
      %p158 = scmp.eq.s32.totalorder %s19, 0
      %p159 = por %p157, %p158
      %p160 = scmp.ne.s32.totalorder %s149, %s152
      %p161 = scmp.eq.s32.totalorder %s24, 1
      %p162 = por %p160, %p161
      %p163 = scmp.ne.s32.totalorder %s152, %s153
      %p164 = scmp.eq.s32.totalorder %s24, 0
      %p165 = por %p163, %p164
      %p166 = scmp.ne.s32.totalorder %s152, %s153
      %p167 = scmp.eq.s32.totalorder %s25, 1
      %p168 = por %p166, %p167
      %p170 = scmp.ne.s32.totalorder %s153, %s169
      %p171 = scmp.eq.s32.totalorder %s25, 0
      %p172 = por %p170, %p171
      %p173 = scmp.le.s32.totalorder 1, %s19
      %p174 = scmp.lt.s32.totalorder %s19, 3
      %p175 = pnand %p173, %p174
      %p176 = pneg %p175
      // Predicated region
      $region9: #{tpu_custom_call.1} parent=5 // pred_check
        _
      $region10: #{tpu_custom_call.1} parent=5 // pred_check_branch
        %178 = sbr.rel (%p175) target = $region12
      $region11: #{tpu_custom_call.1} parent=5 // pred_region
        %s179 = ssub.s32 %s19, 1
      $region12: #{tpu_custom_call.1} parent=5 // pred_fallthru
        _
      %p180 = scmp.lt.s32.totalorder %s19, 2
      // Predicated region
      $region13: #{tpu_custom_call.1} parent=5 // pred_check
        %p181 = pneg %p180
      $region14: #{tpu_custom_call.1} parent=5 // pred_check_branch
        %183 = sbr.rel (%p181) target = $region16
      $region15: #{tpu_custom_call.1} parent=5 // pred_region
        // Predicated region
        $region17: #{tpu_custom_call.1} parent=15 // pred_check
          %p184 = pneg %p53
        $region18: #{tpu_custom_call.1} parent=15 // pred_check_branch
          %186 = sbr.rel (%p184) target = $region20
        $region19: #{tpu_custom_call.1} parent=15 // pred_region
          %s187 = sand.u32 %s43, 1
          %s188 = scalar_lea.sflag [#allocation3], %s187
          %s189 = sand.u32 %s43, 1
          %s190 = smul.addr %s189, 64
          %s191 = scalar_lea.vmem [#allocation2], %s190
          %s192 = smul.u32 8, %s27
          %s194 = ssub.s32 1024, 1024
          %195 = vsyncadd %s188, %s194
          %s196 = smul.addr %s26, 8
          %s197 = sadd.s32 %s192, %s196
          %s198 = smul.addr %s197, 128
          %s199 = scalar_lea.hbm %s0, %s198
          %s200 = sshll.u32 %s191, 4
          %s201 = int_to_ptr.vmem [resolvable:$true] %s200
          %206 = dma.hbm_to_vmem [thread:$0]  %s199, 1024, %s201, %s188, 128, 128, 8
        $region20: #{tpu_custom_call.1} parent=15 // pred_fallthru
          _
        // Predicated region
        $region21: #{tpu_custom_call.1} parent=15 // pred_check
          %p207 = pneg %p79
        $region22: #{tpu_custom_call.1} parent=15 // pred_check_branch
          %209 = sbr.rel (%p207) target = $region24
        $region23: #{tpu_custom_call.1} parent=15 // pred_region
          %s210 = sand.u32 %s19, 1
          %s211 = scalar_lea.sflag [#allocation6], %s210
          %s212 = sand.u32 %s69, 1
          %s213 = smul.addr %s212, 64
          %s214 = scalar_lea.vmem [#allocation5], %s213
          %s216 = ssub.s32 1024, 1024
          %217 = vsyncadd %s211, %s216
          %s218 = smul.addr %s26, 8
          %s219 = smul.addr %s218, 128
          %s220 = scalar_lea.hbm %s1, %s219
          %s221 = sshll.u32 %s214, 4
          %s222 = int_to_ptr.vmem [resolvable:$true] %s221
          %227 = dma.hbm_to_vmem [thread:$0]  %s220, 1024, %s222, %s211, 128, 128, 8
        $region24: #{tpu_custom_call.1} parent=15 // pred_fallthru
          _
        // Predicated region
        $region25: #{tpu_custom_call.1} parent=15 // pred_check
          %p228 = pneg %p105
        $region26: #{tpu_custom_call.1} parent=15 // pred_check_branch
          %230 = sbr.rel (%p228) target = $region28
        $region27: #{tpu_custom_call.1} parent=15 // pred_region
          %s231 = sand.u32 %s19, 1
          %s232 = scalar_lea.sflag [#allocation6], %s231
          %s233 = sand.u32 %s95, 1
          %s234 = smul.addr %s233, 64
          %s235 = scalar_lea.vmem [#allocation7], %s234
          %s237 = ssub.s32 1024, 1024
          %238 = vsyncadd %s232, %s237
          %s239 = smul.addr %s26, 8
          %s240 = smul.addr %s239, 128
          %s241 = scalar_lea.hbm %s2, %s240
          %s242 = sshll.u32 %s235, 4
          %s243 = int_to_ptr.vmem [resolvable:$true] %s242
          %248 = dma.hbm_to_vmem [thread:$0]  %s241, 1024, %s243, %s232, 128, 128, 8
        $region28: #{tpu_custom_call.1} parent=15 // pred_fallthru
          _
        // Predicated region
        $region29: #{tpu_custom_call.1} parent=15 // pred_check
          %p249 = pneg %p131
        $region30: #{tpu_custom_call.1} parent=15 // pred_check_branch
          %251 = sbr.rel (%p249) target = $region32
        $region31: #{tpu_custom_call.1} parent=15 // pred_region
          %p252 = scmp.lt.s32.totalorder %s26, 1
          %s253 = scalar_select %p252, %s26, 1
          %s254 = scalar_lea.vmem %s3, %s253
        $region32: #{tpu_custom_call.1} parent=15 // pred_fallthru
          _
      $region16: #{tpu_custom_call.1} parent=5 // pred_fallthru
        _
      %p255 = scmp.le.s32.totalorder 1, %s19
      %p256 = scmp.lt.s32.totalorder %s19, 3
      %p257 = pnand %p255, %p256
      %p258 = pneg %p257
      // Predicated region
      $region33: #{tpu_custom_call.1} parent=5 // pred_check
        _
      $region34: #{tpu_custom_call.1} parent=5 // pred_check_branch
        %260 = sbr.rel (%p257) target = $region36
      $region35: #{tpu_custom_call.1} parent=5 // pred_region
        %s261 = ssub.s32 %s19, 1
        %s262 = sand.u32 %s46, 1
        %s263 = scalar_lea.sflag [#allocation3], %s262
        %s264 = sand.u32 %s46, 1
        %s265 = smul.addr %s264, 64
        %s266 = scalar_lea.vmem [#allocation2], %s265
        // Predicated region
        $region37: #{tpu_custom_call.1} parent=35 // pred_check
          %p267 = pneg %p59
        $region38: #{tpu_custom_call.1} parent=35 // pred_check_branch
          %269 = sbr.rel (%p267) target = $region40
        $region39: #{tpu_custom_call.1} parent=35 // pred_region
          %270 = dma.done %s263, 1024
        $region40: #{tpu_custom_call.1} parent=35 // pred_fallthru
          _
        %s271 = sand.u32 %s24, 1
        %s272 = scalar_lea.sflag [#allocation6], %s271
        %s273 = sand.u32 %s72, 1
        %s274 = smul.addr %s273, 64
        %s275 = scalar_lea.vmem [#allocation5], %s274
        // Predicated region
        $region41: #{tpu_custom_call.1} parent=35 // pred_check
          %p276 = pneg %p85
        $region42: #{tpu_custom_call.1} parent=35 // pred_check_branch
          %278 = sbr.rel (%p276) target = $region44
        $region43: #{tpu_custom_call.1} parent=35 // pred_region
          %279 = dma.done %s272, 1024
        $region44: #{tpu_custom_call.1} parent=35 // pred_fallthru
          _
        %s280 = sand.u32 %s24, 1
        %s281 = scalar_lea.sflag [#allocation6], %s280
        %s282 = sand.u32 %s98, 1
        %s283 = smul.addr %s282, 64
        %s284 = scalar_lea.vmem [#allocation7], %s283
        // Predicated region
        $region45: #{tpu_custom_call.1} parent=35 // pred_check
          %p285 = pneg %p111
        $region46: #{tpu_custom_call.1} parent=35 // pred_check_branch
          %287 = sbr.rel (%p285) target = $region48
        $region47: #{tpu_custom_call.1} parent=35 // pred_region
          %288 = dma.done %s281, 1024
        $region48: #{tpu_custom_call.1} parent=35 // pred_fallthru
          _
        %s289 = sand.u32 %s46, 1
        %s290 = scalar_lea.sflag [#allocation3], %s289
        %s291 = sand.u32 %s46, 1
        %s292 = smul.addr %s291, 64
        %s293 = scalar_lea.vmem [#allocation2], %s292
        %p294 = pneg %p59
        %p295 = pneg %p56
        %s296 = sand.u32 %s24, 1
        %s297 = scalar_lea.sflag [#allocation6], %s296
        %s298 = sand.u32 %s72, 1
        %s299 = smul.addr %s298, 64
        %s300 = scalar_lea.vmem [#allocation5], %s299
        %p301 = pneg %p85
        %p302 = pneg %p82
        %s303 = sand.u32 %s24, 1
        %s304 = scalar_lea.sflag [#allocation6], %s303
        %s305 = sand.u32 %s98, 1
        %s306 = smul.addr %s305, 64
        %s307 = scalar_lea.vmem [#allocation7], %s306
        %p308 = pneg %p111
        %p309 = pneg %p108
        %p310 = scmp.lt.s32.totalorder %s28, 1
        %s311 = scalar_select %p310, %s28, 1
        %s312 = scalar_lea.vmem %s3, %s311
        %p313 = pneg %p137
        %p314 = pneg %p134
        %p315 = pneg %p165
        %p316 = pneg %p162
        %s317 = sand.u32 %s152, 1
        %s318 = scalar_lea.sflag [#allocation4], %s317
        %s319 = sand.u32 %s152, 1
        %s320 = smul.addr %s319, 64
        %s321 = scalar_lea.vmem [#allocation8], %s320
        %s322 = smul.u32 8, %s29
        %p323 = scmp.lt.s32.totalorder %s28, 1
        %s324 = scalar_select %p323, %s28, 1
        %s325 = scalar_lea.vmem %s3, %s324
        %s326 = smul.u32 8, %s29
        %v328 = vld [vmem:[%s275] sm:$0xff]
        %v329 = vld [vmem:[%s275 + $0x8] sm:$0xff]
        %v330 = vld [vmem:[%s275 + $0x10] sm:$0xff]
        %v331 = vld [vmem:[%s275 + $0x18] sm:$0xff]
        %v332 = vld [vmem:[%s275 + $0x20] sm:$0xff]
        %v333 = vld [vmem:[%s275 + $0x28] sm:$0xff]
        %v334 = vld [vmem:[%s275 + $0x30] sm:$0xff]
        %v335 = vld [vmem:[%s275 + $0x38] sm:$0xff]
        %v336 = vmul.f32 %v328, %v328
        %v337 = vmul.f32 %v329, %v329
        %v338 = vmul.f32 %v330, %v330
        %v339 = vmul.f32 %v331, %v331
        %v340 = vmul.f32 %v332, %v332
        %v341 = vmul.f32 %v333, %v333
        %v342 = vmul.f32 %v334, %v334
        %v343 = vmul.f32 %v335, %v335
        %344 = vadd.xlane.f32.xlu0 %v336
        %v345 = vpop.xlane.xlu0 %344
        %346 = vadd.xlane.f32.xlu0 %v337
        %v347 = vpop.xlane.xlu0 %346
        %348 = vadd.xlane.f32.xlu0 %v338
        %v349 = vpop.xlane.xlu0 %348
        %350 = vadd.xlane.f32.xlu0 %v339
        %v351 = vpop.xlane.xlu0 %350
        %352 = vadd.xlane.f32.xlu0 %v340
        %v353 = vpop.xlane.xlu0 %352
        %354 = vadd.xlane.f32.xlu0 %v341
        %v355 = vpop.xlane.xlu0 %354
        %356 = vadd.xlane.f32.xlu0 %v342
        %v357 = vpop.xlane.xlu0 %356
        %358 = vadd.xlane.f32.xlu0 %v343
        %v359 = vpop.xlane.xlu0 %358
        %v360 = vadd.f32 %v345, 0.0036
        %v361 = vadd.f32 %v347, 0.0036
        %v362 = vadd.f32 %v349, 0.0036
        %v363 = vadd.f32 %v351, 0.0036
        %v364 = vadd.f32 %v353, 0.0036
        %v365 = vadd.f32 %v355, 0.0036
        %v366 = vadd.f32 %v357, 0.0036
        %v367 = vadd.f32 %v359, 0.0036
        %v368 = vrsqrt.pop %v360
        %v369 = vrsqrt.pop %v361
        %v370 = vrsqrt.pop %v362
        %v371 = vrsqrt.pop %v363
        %v372 = vrsqrt.pop %v364
        %v373 = vrsqrt.pop %v365
        %v374 = vrsqrt.pop %v366
        %v375 = vrsqrt.pop %v367
        %v376 = vmul.f32 %v368, 10.0
        %v377 = vmul.f32 %v369, 10.0
        %v378 = vmul.f32 %v370, 10.0
        %v379 = vmul.f32 %v371, 10.0
        %v380 = vmul.f32 %v372, 10.0
        %v381 = vmul.f32 %v373, 10.0
        %v382 = vmul.f32 %v374, 10.0
        %v383 = vmul.f32 %v375, 10.0
        %v384 = vmul.f32 %v328, %v376
        %v385 = vmul.f32 %v329, %v377
        %v386 = vmul.f32 %v330, %v378
        %v387 = vmul.f32 %v331, %v379
        %v388 = vmul.f32 %v332, %v380
        %v389 = vmul.f32 %v333, %v381
        %v390 = vmul.f32 %v334, %v382
        %v391 = vmul.f32 %v335, %v383
        %v392 = vld [vmem:[%s266] sm:$0xff]
        %v393 = vld [vmem:[%s266 + $0x8] sm:$0xff]
        %v394 = vld [vmem:[%s266 + $0x10] sm:$0xff]
        %v395 = vld [vmem:[%s266 + $0x18] sm:$0xff]
        %v396 = vld [vmem:[%s266 + $0x20] sm:$0xff]
        %v397 = vld [vmem:[%s266 + $0x28] sm:$0xff]
        %v398 = vld [vmem:[%s266 + $0x30] sm:$0xff]
        %v399 = vld [vmem:[%s266 + $0x38] sm:$0xff]
        %v400 = vpack.c.bf16 %v393, %v392
        %v401 = vpack.c.bf16 %v395, %v394
        %v402 = vpack.c.bf16 %v397, %v396
        %v403 = vpack.c.bf16 %v399, %v398
        %v404 = vpack.c.bf16 %v385, %v384
        %v405 = vpack.c.bf16 %v387, %v386
        %v406 = vpack.c.bf16 %v389, %v388
        %v407 = vpack.c.bf16 %v391, %v390
        %408 = vmatprep.subr.bf16.mxu0 0
        %409 = vmatpush1.bf16.xpose.msra.mxu0 0
        %410 = vmatprep.subr.bf16.mxu0 0
        %411 = vmatpush1.bf16.xpose.msra.mxu0 0
        %412 = vmatprep.subr.bf16.mxu0 0
        %413 = vmatpush1.bf16.xpose.msra.mxu0 0
        %414 = vmatprep.subr.bf16.mxu0 0
        %415 = vmatpush1.bf16.xpose.msra.mxu0 0
        %416 = vmatprep.subr.bf16.mxu0 0
        %417 = vmatpush1.bf16.xpose.msra.mxu0 %v407
        %418 = vmatprep.subr.bf16.mxu0 0
        %419 = vmatpush1.bf16.xpose.msra.mxu0 %v406
        %420 = vmatprep.subr.bf16.mxu0 0
        %421 = vmatpush1.bf16.xpose.msra.mxu0 %v405
        %422 = vmatprep.subr.bf16.mxu0 0
        %423 = vmatpush1.bf16.xpose.msra.mxu0 %v404
        %424 = vmatprep.subr.bf16.mxu0 0
        %425 = vmatpush2.bf16.xpose.msra.mxu0 0
        %426 = vmatprep.subr.bf16.mxu0 0
        %427 = vmatpush2.bf16.xpose.msra.mxu0 0
        %428 = vmatprep.subr.bf16.mxu0 0
        %429 = vmatpush2.bf16.xpose.msra.mxu0 0
        %430 = vmatprep.subr.bf16.mxu0 0
        %431 = vmatpush2.bf16.xpose.msra.mxu0 0
        %432 = vmatprep.subr.bf16.mxu0 0
        %433 = vmatpush2.bf16.xpose.msra.mxu0 0
        %434 = vmatprep.subr.bf16.mxu0 0
        %435 = vmatpush2.bf16.xpose.msra.mxu0 0
        %436 = vmatprep.subr.bf16.mxu0 0
        %437 = vmatpush2.bf16.xpose.msra.mxu0 0
        %438 = vmatprep.subr.bf16.mxu0 0
        %439 = vmatpush2.bf16.xpose.msra.mxu0 0
        %440 = vmatprep.mubr.bf16.mxu0 0
        %441 = vmatmul.mubr.bf16.gmra.mxu0 %v400
        %v442 = vpop.f32.mrf.mxu0
        %v443 = vadd.f32 0.0, %v442
        %v444 = vpop.f32.mrf.mxu0
        %v445 = vpop.f32.mrf.mxu0
        %v446 = vadd.f32 0.0, %v445
        %v447 = vpop.f32.mrf.mxu0
        %448 = vmatprep.mubr.bf16.mxu0 0
        %449 = vmatmul.mubr.bf16.gmra.mxu0 %v401
        %v450 = vpop.f32.mrf.mxu0
        %v451 = vadd.f32 0.0, %v450
        %v452 = vpop.f32.mrf.mxu0
        %v453 = vpop.f32.mrf.mxu0
        %v454 = vadd.f32 0.0, %v453
        %v455 = vpop.f32.mrf.mxu0
        %456 = vmatprep.mubr.bf16.mxu0 0
        %457 = vmatmul.mubr.bf16.gmra.mxu0 %v402
        %v458 = vpop.f32.mrf.mxu0
        %v459 = vadd.f32 0.0, %v458
        %v460 = vpop.f32.mrf.mxu0
        %v461 = vpop.f32.mrf.mxu0
        %v462 = vadd.f32 0.0, %v461
        %v463 = vpop.f32.mrf.mxu0
        %464 = vmatprep.mubr.bf16.mxu0 0
        %465 = vmatmul.mubr.bf16.gmra.mxu0 %v403
        %v466 = vpop.f32.mrf.mxu0
        %v467 = vadd.f32 0.0, %v466
        %v468 = vpop.f32.mrf.mxu0
        %v469 = vpop.f32.mrf.mxu0
        %v470 = vadd.f32 0.0, %v469
        %v471 = vpop.f32.mrf.mxu0
        %472 = vdwg.mxu0
        %v473 = vld [vmem:[%s325] sm:$0x1]
        %v475 = vlaneseq
        %v476 = vshrl.u32 %v475, 7
        %v477 = vsub.s32 0, %v476
        %v478 = vrot.slane %v473, %v477
        %v480 = vmul.f32 %v443, %v478
        %v481 = vmul.f32 %v446, %v478
        %v482 = vmul.f32 %v451, %v478
        %v483 = vmul.f32 %v454, %v478
        %v484 = vmul.f32 %v459, %v478
        %v485 = vmul.f32 %v462, %v478
        %v486 = vmul.f32 %v467, %v478
        %v487 = vmul.f32 %v470, %v478
        %vm488 = vcmask 523264
        %v489 = vsel %vm488, %v480, -inf
        %490 = vmax.xlane.f32.xlu0 %v489
        %v491 = vpop.xlane.xlu0 %490
        %v492 = vsel %vm488, %v481, -inf
        %493 = vmax.xlane.f32.xlu0 %v492
        %v494 = vpop.xlane.xlu0 %493
        %v495 = vsel %vm488, %v482, -inf
        %496 = vmax.xlane.f32.xlu0 %v495
        %v497 = vpop.xlane.xlu0 %496
        %v498 = vsel %vm488, %v483, -inf
        %499 = vmax.xlane.f32.xlu0 %v498
        %v500 = vpop.xlane.xlu0 %499
        %v501 = vsel %vm488, %v484, -inf
        %502 = vmax.xlane.f32.xlu0 %v501
        %v503 = vpop.xlane.xlu0 %502
        %v504 = vsel %vm488, %v485, -inf
        %505 = vmax.xlane.f32.xlu0 %v504
        %v506 = vpop.xlane.xlu0 %505
        %v507 = vsel %vm488, %v486, -inf
        %508 = vmax.xlane.f32.xlu0 %v507
        %v509 = vpop.xlane.xlu0 %508
        %v510 = vsel %vm488, %v487, -inf
        %511 = vmax.xlane.f32.xlu0 %v510
        %v512 = vpop.xlane.xlu0 %511
        %v513 = vsub.f32 %v480, %v491
        %v514 = vsub.f32 %v481, %v494
        %v515 = vsub.f32 %v482, %v497
        %v516 = vsub.f32 %v483, %v500
        %v517 = vsub.f32 %v484, %v503
        %v518 = vsub.f32 %v485, %v506
        %v519 = vsub.f32 %v486, %v509
        %v520 = vsub.f32 %v487, %v512
        %v521 = vmul.f32 %v513, 1.442695
        %v522 = vpow.pop %v521
        %v523 = vmul.f32 %v514, 1.442695
        %v524 = vpow.pop %v523
        %v525 = vmul.f32 %v515, 1.442695
        %v526 = vpow.pop %v525
        %v527 = vmul.f32 %v516, 1.442695
        %v528 = vpow.pop %v527
        %v529 = vmul.f32 %v517, 1.442695
        %v530 = vpow.pop %v529
        %v531 = vmul.f32 %v518, 1.442695
        %v532 = vpow.pop %v531
        %v533 = vmul.f32 %v519, 1.442695
        %v534 = vpow.pop %v533
        %v535 = vmul.f32 %v520, 1.442695
        %v536 = vpow.pop %v535
        %v537 = vsel %vm488, %v522, 0.0
        %538 = vadd.xlane.f32.xlu0 %v537
        %v539 = vpop.xlane.xlu0 %538
        %v540 = vsel %vm488, %v524, 0.0
        %541 = vadd.xlane.f32.xlu0 %v540
        %v542 = vpop.xlane.xlu0 %541
        %v543 = vsel %vm488, %v526, 0.0
        %544 = vadd.xlane.f32.xlu0 %v543
        %v545 = vpop.xlane.xlu0 %544
        %v546 = vsel %vm488, %v528, 0.0
        %547 = vadd.xlane.f32.xlu0 %v546
        %v548 = vpop.xlane.xlu0 %547
        %v549 = vsel %vm488, %v530, 0.0
        %550 = vadd.xlane.f32.xlu0 %v549
        %v551 = vpop.xlane.xlu0 %550
        %v552 = vsel %vm488, %v532, 0.0
        %553 = vadd.xlane.f32.xlu0 %v552
        %v554 = vpop.xlane.xlu0 %553
        %v555 = vsel %vm488, %v534, 0.0
        %556 = vadd.xlane.f32.xlu0 %v555
        %v557 = vpop.xlane.xlu0 %556
        %v558 = vsel %vm488, %v536, 0.0
        %559 = vadd.xlane.f32.xlu0 %v558
        %v560 = vpop.xlane.xlu0 %559
        %v561 = vrcp.pop %v539
        %v562 = vrcp.pop %v542
        %v563 = vrcp.pop %v545
        %v564 = vrcp.pop %v548
        %v565 = vrcp.pop %v551
        %v566 = vrcp.pop %v554
        %v567 = vrcp.pop %v557
        %v568 = vrcp.pop %v560
        %v569 = vmul.f32 %v522, %v561
        %v570 = vmul.f32 %v524, %v562
        %v571 = vmul.f32 %v526, %v563
        %v572 = vmul.f32 %v528, %v564
        %v573 = vmul.f32 %v530, %v565
        %v574 = vmul.f32 %v532, %v566
        %v575 = vmul.f32 %v534, %v567
        %v576 = vmul.f32 %v536, %v568
        %v577 = vmul.f32 %v569, %v478
        %v578 = vmul.f32 %v570, %v478
        %v579 = vmul.f32 %v571, %v478
        %v580 = vmul.f32 %v572, %v478
        %v581 = vmul.f32 %v573, %v478
        %v582 = vmul.f32 %v574, %v478
        %v583 = vmul.f32 %v575, %v478
        %v584 = vmul.f32 %v576, %v478
        %v585 = vpack.c.bf16 %v578, %v577
        %v586 = vpack.c.bf16 %v580, %v579
        %v587 = vpack.c.bf16 %v582, %v581
        %v588 = vpack.c.bf16 %v584, %v583
        %v589 = vld [vmem:[%s284] sm:$0xff]
        %v590 = vld [vmem:[%s284 + $0x8] sm:$0xff]
        %v591 = vld [vmem:[%s284 + $0x10] sm:$0xff]
        %v592 = vld [vmem:[%s284 + $0x18] sm:$0xff]
        %v593 = vld [vmem:[%s284 + $0x20] sm:$0xff]
        %v594 = vld [vmem:[%s284 + $0x28] sm:$0xff]
        %v595 = vld [vmem:[%s284 + $0x30] sm:$0xff]
        %v596 = vld [vmem:[%s284 + $0x38] sm:$0xff]
        %v597 = vpack.c.bf16 %v590, %v589
        %v598 = vpack.c.bf16 %v592, %v591
        %v599 = vpack.c.bf16 %v594, %v593
        %v600 = vpack.c.bf16 %v596, %v595
        %v602 = vsel %vm488, %v585, 0
        %v605 = vsel %vm488, %v586, 0
        %v608 = vsel %vm488, %v587, 0
        %v611 = vsel %vm488, %v588, 0
        %613 = vmatprep.subr.bf16.mxu0 0
        %614 = vmatpush1.bf16.msra.mxu0 0
        %615 = vmatprep.subr.bf16.mxu0 0
        %616 = vmatpush1.bf16.msra.mxu0 0
        %617 = vmatprep.subr.bf16.mxu0 0
        %618 = vmatpush1.bf16.msra.mxu0 0
        %619 = vmatprep.subr.bf16.mxu0 0
        %620 = vmatpush1.bf16.msra.mxu0 0
        %621 = vmatprep.subr.bf16.mxu0 0
        %622 = vmatpush1.bf16.msra.mxu0 %v600
        %623 = vmatprep.subr.bf16.mxu0 0
        %624 = vmatpush1.bf16.msra.mxu0 %v599
        %625 = vmatprep.subr.bf16.mxu0 0
        %626 = vmatpush1.bf16.msra.mxu0 %v598
        %627 = vmatprep.subr.bf16.mxu0 0
        %628 = vmatpush1.bf16.msra.mxu0 %v597
        %629 = vmatprep.subr.bf16.mxu0 0
        %630 = vmatpush2.bf16.msra.mxu0 0
        %631 = vmatprep.subr.bf16.mxu0 0
        %632 = vmatpush2.bf16.msra.mxu0 0
        %633 = vmatprep.subr.bf16.mxu0 0
        %634 = vmatpush2.bf16.msra.mxu0 0
        %635 = vmatprep.subr.bf16.mxu0 0
        %636 = vmatpush2.bf16.msra.mxu0 0
        %637 = vmatprep.subr.bf16.mxu0 0
        %638 = vmatpush2.bf16.msra.mxu0 0
        %639 = vmatprep.subr.bf16.mxu0 0
        %640 = vmatpush2.bf16.msra.mxu0 0
        %641 = vmatprep.subr.bf16.mxu0 0
        %642 = vmatpush2.bf16.msra.mxu0 0
        %643 = vmatprep.subr.bf16.mxu0 0
        %644 = vmatpush2.bf16.msra.mxu0 0
        %645 = vmatprep.mubr.bf16.mxu0 0
        %646 = vmatmul.mubr.bf16.gmra.mxu0 %v602
        %v647 = vpop.f32.mrf.mxu0
        %v648 = vadd.f32 0.0, %v647
        %v649 = vpop.f32.mrf.mxu0
        %v650 = vpop.f32.mrf.mxu0
        %v651 = vadd.f32 0.0, %v650
        %v652 = vpop.f32.mrf.mxu0
        %653 = vmatprep.mubr.bf16.mxu0 0
        %654 = vmatmul.mubr.bf16.gmra.mxu0 %v605
        %v655 = vpop.f32.mrf.mxu0
        %v656 = vadd.f32 0.0, %v655
        %v657 = vpop.f32.mrf.mxu0
        %v658 = vpop.f32.mrf.mxu0
        %v659 = vadd.f32 0.0, %v658
        %v660 = vpop.f32.mrf.mxu0
        %661 = vmatprep.mubr.bf16.mxu0 0
        %662 = vmatmul.mubr.bf16.gmra.mxu0 %v608
        %v663 = vpop.f32.mrf.mxu0
        %v664 = vadd.f32 0.0, %v663
        %v665 = vpop.f32.mrf.mxu0
        %v666 = vpop.f32.mrf.mxu0
        %v667 = vadd.f32 0.0, %v666
        %v668 = vpop.f32.mrf.mxu0
        %669 = vmatprep.mubr.bf16.mxu0 0
        %670 = vmatmul.mubr.bf16.gmra.mxu0 %v611
        %v671 = vpop.f32.mrf.mxu0
        %v672 = vadd.f32 0.0, %v671
        %v673 = vpop.f32.mrf.mxu0
        %v674 = vpop.f32.mrf.mxu0
        %v675 = vadd.f32 0.0, %v674
        %v676 = vpop.f32.mrf.mxu0
        %677 = vdwg.mxu0
        %678 = vst [vmem:[%s321] sm:$0xff] %v648
        %679 = vst [vmem:[%s321 + $0x8] sm:$0xff] %v651
        %680 = vst [vmem:[%s321 + $0x10] sm:$0xff] %v656
        %681 = vst [vmem:[%s321 + $0x18] sm:$0xff] %v659
        %682 = vst [vmem:[%s321 + $0x20] sm:$0xff] %v664
        %683 = vst [vmem:[%s321 + $0x28] sm:$0xff] %v667
        %684 = vst [vmem:[%s321 + $0x30] sm:$0xff] %v672
        %685 = vst [vmem:[%s321 + $0x38] sm:$0xff] %v675
        %s686 = sand.u32 %s152, 1
        %s687 = scalar_lea.sflag [#allocation4], %s686
        %s688 = sand.u32 %s152, 1
        %s689 = smul.addr %s688, 64
        %s690 = scalar_lea.vmem [#allocation8], %s689
        // Predicated region
        $region49: #{tpu_custom_call.1} parent=35 // pred_check
          %p691 = pneg %p162
        $region50: #{tpu_custom_call.1} parent=35 // pred_check_branch
          %693 = sbr.rel (%p691) target = $region52
        $region51: #{tpu_custom_call.1} parent=35 // pred_region
          %s694 = smul.u32 8, %s29
          %s696 = ssub.s32 1024, 1024
          %697 = vsyncadd %s687, %s696
          %s698 = smul.addr %s28, 8
          %s699 = sadd.s32 %s694, %s698
          %s700 = smul.addr %s699, 128
          %s701 = scalar_lea.hbm %s4, %s700
          %s702 = sshll.u32 %s690, 4
          %s703 = int_to_ptr.vmem [resolvable:$true] %s702
          %708 = dma.vmem_to_hbm [thread:$0]  %s703, 1024, %s701, %s687, 128, 128, 8
        $region52: #{tpu_custom_call.1} parent=35 // pred_fallthru
          _
      $region36: #{tpu_custom_call.1} parent=5 // pred_fallthru
        _
      %p709 = scmp.le.s32.totalorder 2, %s19
      // Predicated region
      $region53: #{tpu_custom_call.1} parent=5 // pred_check
        %p710 = pneg %p709
      $region54: #{tpu_custom_call.1} parent=5 // pred_check_branch
        %712 = sbr.rel (%p710) target = $region56
      $region55: #{tpu_custom_call.1} parent=5 // pred_region
        %s713 = ssub.s32 %s19, 2
        // Predicated region
        $region57: #{tpu_custom_call.1} parent=55 // pred_check
          %p714 = pneg %p168
        $region58: #{tpu_custom_call.1} parent=55 // pred_check_branch
          %716 = sbr.rel (%p714) target = $region60
        $region59: #{tpu_custom_call.1} parent=55 // pred_region
          %s717 = sand.u32 %s153, 1
          %s718 = scalar_lea.sflag [#allocation4], %s717
          %s719 = sand.u32 %s153, 1
          %s720 = smul.addr %s719, 64
          %s721 = scalar_lea.vmem [#allocation8], %s720
          %722 = dma.done %s718, 1024
        $region60: #{tpu_custom_call.1} parent=55 // pred_fallthru
          _
      $region56: #{tpu_custom_call.1} parent=5 // pred_fallthru
        _
    $region6: #{tpu_custom_call.1} parent=1 // loop_footer
      %s23 = sadd.s32 1, %s19
    $region7: #{tpu_custom_call.1} parent=1 // loop_footer_branch
      %18 = sbr.rel target = $region3
    $region8: #{tpu_custom_call.1} parent=1 // loop_exit
      _
    %723 = vsyncpa [#allocation3], 1
    %s724 = scalar_lea.sflag [#allocation3], 1
    %725 = vsyncpa %s724, 1
    %726 = vsyncpa [#allocation6], 1
    %s727 = scalar_lea.sflag [#allocation6], 1
    %728 = vsyncpa %s727, 1
    %729 = vsyncpa [#allocation4], 1
    %s730 = scalar_lea.sflag [#allocation4], 1
    %731 = vsyncpa %s730, 1

</llo_original>
